<compile_context>
chip_gen: v7x
topology: tpu7x:2x2x1
jax: 0.10.0
libtpu: 0.0.40
codegen_flags: <defaults>
</compile_context>

<pallas_src>
import functools

import numpy as np
import jax
import jax.numpy as jnp
from jax.experimental import pallas as pl
from jax.experimental.pallas import tpu as pltpu

KT = 9                 # temporal kernel size
PAD = (KT - 1) // 2    # temporal padding = 4
LANE = 128             # TPU lane width


# --------------------- pltpu.roll direction probe (one-time) ---------------------

_ROLL_SIGN = None


def _roll_sign():
    """+1 if pltpu.roll matches jnp.roll (shift moves data to higher indices), else -1.

    Determined once with a tiny eager probe kernel so the static temporal shift
    amounts baked into the main kernel are robust across Pallas/Mosaic versions.
    """
    global _ROLL_SIGN
    if _ROLL_SIGN is None:
        def probe(x_ref, o_ref):
            o_ref[...] = pltpu.roll(x_ref[...], 1, 1)

        x = jax.lax.broadcasted_iota(jnp.float32, (8, LANE), 1)
        out = pl.pallas_call(
            probe, out_shape=jax.ShapeDtypeStruct((8, LANE), jnp.float32))(x)
        if bool(jnp.array_equal(out, jnp.roll(x, 1, 1))):
            _ROLL_SIGN = 1
        elif bool(jnp.array_equal(out, jnp.roll(x, -1, 1))):
            _ROLL_SIGN = -1
        else:
            raise RuntimeError("unexpected pltpu.roll semantics")
    return _ROLL_SIGN


# ----------------------------- fused 3-layer kernel -----------------------------

def _stgcn3_kernel(T, V, Cout, K, roll_shifts, *refs):
    (x_ref, mix_ref, mask_ref,
     w1, sh1_1, wt1, sh2_1, shr1,
     wg2, sh1_2, wt2, sh2_2,
     wg3, sh1_3, wt3, sh2_3,
     o_ref) = refs

    def graph_mix(y):
        # y: (K*Cout[+Cout], TV) with BN1 scale pre-folded into the GCN rows.
        # K block-diagonal (TV, TV) right-matmuls, accumulated into (Cout, TV).
        z = jnp.dot(y[0:Cout, :], mix_ref[0], preferred_element_type=jnp.float32)
        for k in range(1, K):
            z = z + jnp.dot(y[k * Cout:(k + 1) * Cout, :], mix_ref[k],
                            preferred_element_type=jnp.float32)
        return z

    def temporal(h, wt_ref, sh2_ref):
        # 9x1 temporal conv (stride 1, pad 4) as KT accumulated matmuls on
        # lane-shifted copies of h.  Shifts go to the XLU (pltpu.roll), boundary
        # zeroing uses precomputed masks (VPU) -- no scratch, no misaligned stores.
        acc = jnp.dot(wt_ref[PAD], h, preferred_element_type=jnp.float32)  # centre tap
        for kt in range(KT):
            if kt == PAD:
                continue
            hs = pltpu.roll(h, roll_shifts[kt], 1) * mask_ref[kt]
            acc = acc + jnp.dot(wt_ref[kt], hs, preferred_element_type=jnp.float32)
        return acc + sh2_ref[...]          # conv bias + BN2 (folded)

    def layer(xin, wg_ref, sh1_ref, wt_ref, sh2_ref, res):
        y = jnp.dot(wg_ref[...], xin, preferred_element_type=jnp.float32)
        h = jnp.maximum(graph_mix(y) + sh1_ref[...], 0.0)     # BN1 (folded) + ReLU
        return jnp.maximum(temporal(h, wt_ref, sh2_ref) + res, 0.0)

    x = x_ref[...]                                             # (Cin, TV)

    # ---- Layer 1: residual 1x1 conv fused as extra rows of the GCN matmul ----
    y1 = jnp.dot(w1[...], x, preferred_element_type=jnp.float32)   # (K*Cout+Cout, TV)
    res1 = y1[K * Cout:, :] + shr1[...]                            # folded conv+BN residual
    h1 = jnp.maximum(graph_mix(y1) + sh1_1[...], 0.0)
    a1 = jnp.maximum(temporal(h1, wt1, sh2_1) + res1, 0.0)

    # ---- Layers 2, 3: identity residual ----
    a2 = layer(a1, wg2, sh1_2, wt2, sh2_2, a1)
    a3 = layer(a2, wg3, sh1_3, wt3, sh2_3, a2)

    o_ref[...] = a3                                            # single lane-dense store


# ------------------------------ wrapper / builder ------------------------------

def build_stgcn_forward(a, layer_params, input_shape):
    """Fold BN/bias into weights host-side and return a jitted forward function.

    a            : (K, V, V) adjacency stack (Graph buffer)
    layer_params : 3 dicts of raw parameters (PyTorch layout)
    input_shape  : (N, Cin, T, V)
    """
    N, Cin, T, V = input_shape
    K = int(a.shape[0])
    Cout = layer_params[0]["wg"].shape[-1]
    TV = T * V

    assert len(layer_params) == 3
    assert "wr" in layer_params[0] and all("wr" not in p for p in layer_params[1:])
    assert TV % LANE == 0, "per-sample lane span must be lane-dense (multiple of 128)"

    af = a.astype(jnp.float32)

    # Graph mixing: block-diagonal kron(I_T, A_k)  (TV, TV), shared by all layers.
    eye_t = jnp.eye(T, dtype=jnp.float32)
    mix = jnp.stack([jnp.kron(eye_t, af[k]) for k in range(K)])          # (K, TV, TV)
    colsum = af.sum(axis=1)                                              # (K, V): sum_v A[k,v,w]

    # Temporal-tap masks: mask[kt, 0, t*V+v] = 1 iff 0 <= t + kt - PAD < T.
    t_of_lane = np.arange(TV) // V
    mask_np = np.zeros((KT, 1, TV), np.float32)
    for kt in range(KT):
        lo, hi = max(0, PAD - kt), min(T, T + PAD - kt)
        mask_np[kt, 0] = ((t_of_lane >= lo) & (t_of_lane < hi)).astype(np.float32)
    mask = jnp.asarray(mask_np)

    # Static lane-shift amounts for pltpu.roll (sign calibrated by the probe).
    sgn = _roll_sign()
    roll_shifts = tuple(int((sgn * (PAD - kt) * V) % TV) for kt in range(KT))

    def fold_layer(p):
        s1, t1 = p["s1"][0], p["t1"][0]
        s2, t2 = p["s2"][0], p["t2"][0]
        # GCN weight, rows ordered (k, o), BN1 scale folded in:   (K*Cout, Cin)
        wg_rows = (jnp.transpose(p["wg"], (0, 2, 1)) * s1[None, :, None]).reshape(K * Cout, -1)
        # post-mix GCN bias (depends on target vertex w) + BN1 shift, tiled over t.
        bias_mix = jnp.einsum("ko,kw->ow", p["bg"].reshape(K, Cout), colsum)   # (Cout, V)
        sh1 = jnp.tile(s1[:, None] * bias_mix + t1[:, None], (1, T))           # (Cout, TV)
        # temporal taps with BN2 scale folded:  wt[kt] @ h  form, (KT, Cout, Cout)
        wt = jnp.transpose(p["wt"], (0, 2, 1)) * s2[None, :, None]
        sh2 = (s2 * p["bt"][0] + t2).reshape(Cout, 1)
        return wg_rows, sh1, wt, sh2

    p1 = layer_params[0]
    wg1, sh1_1, wt1, sh2_1 = fold_layer(p1)
    sr, tr = p1["sr"][0], p1["tr"][0]
    wr_rows = jnp.transpose(p1["wr"]) * sr[:, None]                    # (Cout, Cin)
    w1 = jnp.concatenate([wg1, wr_rows], axis=0)                       # (K*Cout+Cout, Cin)
    shr1 = (sr * p1["br"][0] + tr).reshape(Cout, 1)

    wg2, sh1_2, wt2, sh2_2 = fold_layer(layer_params[1])
    wg3, sh1_3, wt3, sh2_3 = fold_layer(layer_params[2])

    weights = [w1, sh1_1, wt1, sh2_1, shr1,
               wg2, sh1_2, wt2, sh2_2,
               wg3, sh1_3, wt3, sh2_3]

    def const_spec(arr):
        nd = arr.ndim
        return pl.BlockSpec(arr.shape, lambda n, _nd=nd: (0,) * _nd)

    in_specs = ([pl.BlockSpec((None, Cin, TV), lambda n: (n, 0, 0)),
                 const_spec(mix), const_spec(mask)]
                + [const_spec(w) for w in weights])
    out_spec = pl.BlockSpec((None, Cout, TV), lambda n: (n, 0, 0))

    kernel = functools.partial(_stgcn3_kernel, T, V, Cout, K, roll_shifts)
    call = pl.pallas_call(
        kernel,
        out_shape=jax.ShapeDtypeStruct((N, Cout, TV), jnp.float32),
        grid=(N,),
        in_specs=in_specs,
        out_specs=out_spec,
        compiler_params=pltpu.CompilerParams(dimension_semantics=("parallel",)),
    )

    def forward(x_nchw):
        # NCHW is already channel-major: boundary "transposes" are free reshapes.
        x2 = x_nchw.reshape(N, Cin, TV).astype(jnp.float32)
        out = call(x2, mix, mask, *weights)
        return out.reshape(N, Cout, T, V)

    return jax.jit(forward)


# ----------------------- deterministic parameter init -----------------------

def fold_bn(key, c, eps=1e-5):
    k1, k2, k3, k4 = jax.random.split(key, 4)
    gamma = jax.random.uniform(k1, (c,), jnp.float32, 0.5, 1.5)
    beta = 0.1 * jax.random.normal(k2, (c,), jnp.float32)
    mean = 0.1 * jax.random.normal(k3, (c,), jnp.float32)
    var = jax.random.uniform(k4, (c,), jnp.float32, 0.5, 1.5)
    s = gamma / jnp.sqrt(var + eps)
    t = beta - s * mean
    return s.reshape(1, c), t.reshape(1, c)


def init_layer(key, cin, cout, K, residual_conv):
    keys = jax.random.split(key, 8)
    p = dict(
        wg=0.2 * jax.random.normal(keys[0], (K, cin, cout), jnp.float32),
        bg=0.1 * jax.random.normal(keys[1], (K, 1, cout), jnp.float32),
        wt=0.1 * jax.random.normal(keys[3], (KT, cout, cout), jnp.float32),
        bt=0.1 * jax.random.normal(keys[4], (1, cout), jnp.float32),
    )
    p["s1"], p["t1"] = fold_bn(keys[2], cout)
    p["s2"], p["t2"] = fold_bn(keys[5], cout)
    if residual_conv:
        p["wr"] = 0.2 * jax.random.normal(keys[6], (cin, cout), jnp.float32)
        p["br"] = 0.1 * jax.random.normal(keys[7], (1, cout), jnp.float32)
        p["sr"], p["tr"] = fold_bn(jax.random.fold_in(key, 99), cout)
    return p


# ----------------------------- pure-JAX reference ----------------------------

def ref_layer(x, a, p):
    # x: (N, T, V, Cin), a: (K, V, V)
    T = x.shape[1]
    y = jnp.einsum("ntvi,kio->ntkvo", x, p["wg"]) + p["bg"][None, None, :, :, :]
    z = jnp.einsum("ntkvo,kvw->ntwo", y, a)
    h = jnp.maximum(z * p["s1"][0] + p["t1"][0], 0.0)
    hp = jnp.pad(h, ((0, 0), (PAD, PAD), (0, 0), (0, 0)))
    conv = sum(jnp.einsum("ntvc,cd->ntvd", hp[:, kt:kt + T], p["wt"][kt])
               for kt in range(KT))
    tcn = (conv + p["bt"][0]) * p["s2"][0] + p["t2"][0]
    if "wr" in p:
        res = (jnp.einsum("ntvi,io->ntvo", x, p["wr"]) + p["br"][0]) * p["sr"][0] + p["tr"][0]
    else:
        res = x
    return jnp.maximum(tcn + res, 0.0)


if __name__ == "__main__":
    key = jax.random.PRNGKey(0)
    N, Cin, Cout, T, V, K = 2, 4, 32, 16, 16, 3

    kx, ka, k0, k1, k2 = jax.random.split(key, 5)
    x_nchw = jax.random.normal(kx, (N, Cin, T, V), jnp.float32)   # PyTorch NCHW layout
    # Synthetic deterministic adjacency buffer (stand-in for Graph(ntu-rgb+d, spatial)).
    a = jax.random.uniform(ka, (K, V, V), jnp.float32) / V

    layer_params = [
        init_layer(k0, Cin, Cout, K, residual_conv=True),    # in != out -> conv residual
        init_layer(k1, Cout, Cout, K, residual_conv=False),  # identity residual
        init_layer(k2, Cout, Cout, K, residual_conv=False),  # identity residual
    ]

    fwd = build_stgcn_forward(a, layer_params, (N, Cin, T, V))
    out = jax.block_until_ready(fwd(x_nchw))
    assert out.shape == (N, Cout, T, V), out.shape

    # pure-JAX reference check
    xr = jnp.transpose(x_nchw, (0, 2, 3, 1))
    for p in layer_params:
        xr = ref_layer(xr, a, p)
    ref = jnp.transpose(xr, (0, 3, 1, 2))
    scale = float(jnp.max(jnp.abs(ref))) + 1e-6
    max_err = float(jnp.max(jnp.abs(out - ref)))
    assert max_err / scale < 5e-3, (max_err, scale)

    print("KERNEL_OK")
</pallas_src>

<mosaic_0001>
module attributes {stable_mosaic.version = 11 : i64} {
  func.func @probe(%arg0: memref<8x128xf32, #tpu.memory_space<vmem>>, %arg1: memref<8x128xf32, #tpu.memory_space<vmem>>) attributes {dimension_semantics = [], scalar_prefetch = 0 : i64, scratch_operands = 0 : i64, tpu.core_type = #tpu.core_type<tc>} {
    %c0 = arith.constant 0 : index
    %c0_0 = arith.constant 0 : index
    %0 = vector.load %arg0[%c0, %c0_0] : memref<8x128xf32, #tpu.memory_space<vmem>>, vector<8x128xf32>
    %c1_i32 = arith.constant 1 : i32
    %1 = tpu.dynamic_rotate %0 by %c1_i32 dim 1 : vector<8x128xf32>, i32 -> vector<8x128xf32>
    %c0_1 = arith.constant 0 : index
    %c0_2 = arith.constant 0 : index
    %2 = vector.load %arg1[%c0_1, %c0_2] : memref<8x128xf32, #tpu.memory_space<vmem>>, vector<8x128xf32>
    tpu.vector_store %arg1[%c0_1, %c0_2], %1 {strides = array<i32>} : memref<8x128xf32, #tpu.memory_space<vmem>>, vector<8x128xf32>,
    return
  }
}

</mosaic_0001>

<llo_original>
// kernel: tpu_custom_call.1
$region0: #{tpu_custom_call.1}
  #allocation0 [shape = 'u32[]', space=smem, size = 0x4, offset = 0x4, fixed_abs, tag = 'smem constant byte address 0x4 - core index']
  #allocation1 [shape = 'u32[144,128]{1,0:T(1,128)}', space=vmem, size = 0x12000, scoped, tag = 'internal scratch']
  %s0 = inlined_call_operand.hbm [shape: f32[8,128], index: 0, kind: input, shape index: {}]
  %s1 = inlined_call_operand.hbm [shape: f32[8,128], index: 1, kind: output, shape index: {}]
  %s2 = sld [smem:[#allocation0]]
  $region18: #{tpu_custom_call.1} parent=0
    _
  %s4 = ssub.s32 1, %s2
  %s5 = scalar_select 0, %s4, %s2
  $region1: #{tpu_custom_call.1} parent=0
    #allocation2 [shape = 'u8[4096]{0}', space=vmem, size = 0x1000, scoped, tag = 'input window, operand 0, single buffered']
    #allocation3 [shape = 's32[1]{0}', space=sflag, size = 0x4, scoped, tag = 'scoped memory for tpu_custom_call.1']
    #allocation4 [shape = 's32[1]{0}', space=sflag, size = 0x4, scoped, tag = 'scoped memory for tpu_custom_call.1']
    #allocation5 [shape = 'u8[4096]{0}', space=vmem, size = 0x1000, scoped, tag = 'output window, operand 0, single buffered']
    %6 = vsyncpa [#allocation3], 0
    %7 = vsyncpa [#allocation4], 0
    // Predicated region
    $region2: #{tpu_custom_call.1} parent=1 // pred_check
      _
    $region3: #{tpu_custom_call.1} parent=1 // pred_check_branch
      %9 = sbr.rel (0) target = $region5
    $region4: #{tpu_custom_call.1} parent=1 // pred_region
      %s11 = ssub.s32 128, 128
      %12 = vsyncadd [#allocation3], %s11
      %s14 = sshll.u32 [#allocation2], 4
      %s15 = int_to_ptr.vmem [resolvable:$true] %s14
      %17 = dma.hbm_to_vmem [thread:$0]  %s0, 128, %s15, [#allocation3]
    $region5: #{tpu_custom_call.1} parent=1 // pred_fallthru
      _
    // Predicated region
    $region6: #{tpu_custom_call.1} parent=1 // pred_check
      _
    $region7: #{tpu_custom_call.1} parent=1 // pred_check_branch
      %19 = sbr.rel (0) target = $region9
    $region8: #{tpu_custom_call.1} parent=1 // pred_region
      %20 = dma.done [#allocation3], 128
    $region9: #{tpu_custom_call.1} parent=1 // pred_fallthru
      _
    %v21 = vld [vmem:[#allocation2] sm:$0xff]
    %22 = vrot.lane.b32.xlu0 %v21, 1
    %v23 = vpop.permute.xlu0 %22
    %24 = vst [vmem:[#allocation5] sm:$0xff] %v23
    // Predicated region
    $region10: #{tpu_custom_call.1} parent=1 // pred_check
      _
    $region11: #{tpu_custom_call.1} parent=1 // pred_check_branch
      %26 = sbr.rel (0) target = $region13
    $region12: #{tpu_custom_call.1} parent=1 // pred_region
      %s28 = ssub.s32 128, 128
      %29 = vsyncadd [#allocation4], %s28
      %s31 = sshll.u32 [#allocation5], 4
      %s32 = int_to_ptr.vmem [resolvable:$true] %s31
      %34 = dma.vmem_to_hbm [thread:$0]  %s32, 128, %s1, [#allocation4]
    $region13: #{tpu_custom_call.1} parent=1 // pred_fallthru
      _
    // Predicated region
    $region14: #{tpu_custom_call.1} parent=1 // pred_check
      _
    $region15: #{tpu_custom_call.1} parent=1 // pred_check_branch
      %36 = sbr.rel (0) target = $region17
    $region16: #{tpu_custom_call.1} parent=1 // pred_region
      %37 = dma.done [#allocation4], 128
    $region17: #{tpu_custom_call.1} parent=1 // pred_fallthru
      _
    %38 = vsyncpa [#allocation3], 1
    %39 = vsyncpa [#allocation4], 1

</llo_original>
